<compile_context>
chip_gen: v5e
topology: v5e:2x2
jax: 0.10.0
libtpu: 0.0.40
codegen_flags: <defaults>
</compile_context>

<pallas_src>
import functools

import jax
import jax.numpy as jnp
from jax.experimental import pallas as pl
from jax.experimental.pallas import tpu as pltpu

# ---------------- LogQuantConfig defaults ----------------
MOMENTUM = 0.1
THRESHOLD = 1e-5
EPS = 1e-8
BITS = 8
MAX_VALUE = 2 ** BITS - 1          # 255 (torch config value)
# q is stored in 7 bits of the packed byte; with eps=1e-8 q never exceeds ~27,
# so clipping at 127 is value-identical to torch's clamp(.,0,255).to(int8)
# (which would silently wrap for q>127 anyway).
QMAX = min(MAX_VALUE, 127)

LANE = 128
ROW_ALIGN = 32                     # int8-friendly sublane tiling
MAX_BLOCK_ROWS = 8192              # 4 MiB f32 per stream per tile
VMEM_LIMIT = 32 * 1024 * 1024      # explicit scoped-VMEM budget (all gens)

R_DTYPE = jnp.bfloat16             # straight-through value storage dtype
D_DTYPE = jnp.bfloat16             # simulated-output intermediate storage dtype


# ---------------- small helpers (host-side glue) ----------------
def _cdiv(a, b):
    return -(-a // b)


def _round_up(v, m):
    return _cdiv(v, m) * m


def _to_2d(x):
    """Flatten to (rows, 128) with rows a multiple of ROW_ALIGN.
    Pads (one HBM copy) only when x.size % (ROW_ALIGN*LANE) != 0."""
    n = x.size
    rows = _round_up(max(_cdiv(n, LANE), 1), ROW_ALIGN)
    flat = x.reshape(-1)
    if rows * LANE != n:
        flat = jnp.pad(flat, (0, rows * LANE - n))
    return flat.reshape(rows, LANE), n


def _from_2d(x2d, n, shape):
    flat = x2d.reshape(-1)
    if flat.shape[0] != n:
        flat = flat[:n]
    return flat.reshape(shape)


def _pick_block_rows(rows, override=None):
    br = MAX_BLOCK_ROWS if override is None else override
    br = _round_up(br, ROW_ALIGN)
    return min(br, rows)


# ---------------- in-kernel helpers ----------------
def _exp2_neg(q_i32):
    """Exact 2**(-q) for integer q in [0,126] via exponent bits (VPU, no EUP).
    q >= 127 saturates to 2**-126; callers clamp with EPS where torch does."""
    qc = jnp.clip(q_i32, 0, 126)
    return pltpu.bitcast((127 - qc) << 23, jnp.float32)


def _tail_mask(shape, block_rows, n_valid):
    """valid = (global flat element index) < n_valid for the current block."""
    base = pl.program_id(0) * block_rows
    row_ids = jax.lax.broadcasted_iota(jnp.int32, shape, 0) + base
    lane_ids = jax.lax.broadcasted_iota(jnp.int32, shape, 1)
    return (row_ids * LANE + lane_ids) < n_valid


def _store_partial_max(mx_ref, vals):
    """Per-block partial max: reduce over rows, keep lanes, broadcast to the
    (8, LANE) output block (keeps the block 8-sublane aligned)."""
    m = jnp.max(vals, axis=0, keepdims=True)          # (1, LANE)
    mx_ref[...] = jnp.broadcast_to(m, mx_ref.shape)   # (8, LANE)


def _pack_qs(q_i32, neg_bool):
    """Pack magnitude q (0..127) and sign into one int8: bit7 = negative."""
    return jnp.where(neg_bool, q_i32 - 128, q_i32).astype(jnp.int8)


# ======================================================================
# Kernel 1: elementwise add fused with per-block abs-max (default path)
# ======================================================================
def _add_absmax_kernel(x_ref, y_ref, out_ref, mx_ref, *,
                       block_rows, n_valid, need_mask):
    out = x_ref[...].astype(jnp.float32) + y_ref[...].astype(jnp.float32)
    out_ref[...] = out.astype(out_ref.dtype)
    a = jnp.abs(out)
    if need_mask:
        a = jnp.where(_tail_mask(a.shape, block_rows, n_valid), a, 0.0)
    _store_partial_max(mx_ref, a)


def _add_with_absmax(x2d, y2d, n_valid, block_rows, out_dtype):
    rows, _ = x2d.shape
    grid = _cdiv(rows, block_rows)
    need_mask = (rows % block_rows != 0) or (n_valid != rows * LANE)
    blk = pl.BlockSpec((block_rows, LANE), lambda i: (i, 0))
    mx_spec = pl.BlockSpec((8, LANE), lambda i: (i, 0))
    kernel = functools.partial(_add_absmax_kernel, block_rows=block_rows,
                               n_valid=n_valid, need_mask=need_mask)
    out, mx = pl.pallas_call(
        kernel,
        out_shape=(jax.ShapeDtypeStruct((rows, LANE), out_dtype),
                   jax.ShapeDtypeStruct((8 * grid, LANE), jnp.float32)),
        grid_spec=pltpu.PrefetchScalarGridSpec(
            num_scalar_prefetch=0,
            grid=(grid,),
            in_specs=[blk, blk],
            out_specs=(blk, mx_spec)),
        compiler_params=pltpu.CompilerParams(
            dimension_semantics=("parallel",),
            vmem_limit_bytes=VMEM_LIMIT),
    )(x2d, y2d)
    return out, jnp.max(mx)


# ======================================================================
# Kernel 2: log quantization (LogQuantUtils.quantize_tensor), sign-packed,
#           optional fused straight-through value r, per-block err-max.
# ======================================================================
def _quantize_kernel(t_ref, scale_ref, *out_refs,
                     block_rows, n_valid, need_mask, emit_r):
    if emit_r:
        q1s_ref, q2s_ref, r_ref, em_ref = out_refs
    else:
        q1s_ref, q2s_ref, em_ref = out_refs
        r_ref = None

    scale = jnp.maximum(scale_ref[0, 0], EPS)
    inv = 1.0 / scale                      # hoisted: one reciprocal per tile
    t = t_ref[...].astype(jnp.float32)

    neg = t < 0.0                          # torch: sign(0) remapped to +1
    q1f = jnp.clip(jnp.round(-jnp.log2(jnp.abs(t) * inv + EPS)),
                   0.0, float(QMAX))
    q1i = q1f.astype(jnp.int32)
    q1s_ref[...] = _pack_qs(q1i, neg)

    p1 = _exp2_neg(q1i)                    # torch uses the un-clamped 2^-q1 here
    err = t * inv + EPS - p1
    abs_err = jnp.abs(err)
    neg_e = err < 0.0
    q2f = jnp.clip(jnp.round(-jnp.log2(abs_err * inv + EPS)),
                   0.0, float(QMAX))
    q2i = q2f.astype(jnp.int32)
    q2s_ref[...] = _pack_qs(q2i, neg_e)

    if emit_r:
        s_f = jnp.where(neg, -1.0, 1.0)
        se_f = jnp.where(neg_e, -1.0, 1.0)
        p2 = _exp2_neg(q2i)
        r = scale * (s_f * jnp.maximum(p1, EPS) + se_f * jnp.maximum(p2, EPS))
        r_ref[...] = r.astype(r_ref.dtype)

    if need_mask:
        abs_err = jnp.where(_tail_mask(abs_err.shape, block_rows, n_valid),
                            abs_err, 0.0)
    _store_partial_max(em_ref, abs_err)


def _quantize_call(t2d, scale11, n_valid, block_rows, *, emit_r):
    rows, _ = t2d.shape
    grid = _cdiv(rows, block_rows)
    need_mask = (rows % block_rows != 0) or (n_valid != rows * LANE)
    blk = pl.BlockSpec((block_rows, LANE), lambda i: (i, 0))
    mx_spec = pl.BlockSpec((8, LANE), lambda i: (i, 0))
    smem = pl.BlockSpec(memory_space=pltpu.MemorySpace.SMEM)

    out_shape = [jax.ShapeDtypeStruct((rows, LANE), jnp.int8),   # packed q1|s
                 jax.ShapeDtypeStruct((rows, LANE), jnp.int8)]   # packed q2|s_err
    out_specs = [blk, blk]
    if emit_r:
        out_shape.append(jax.ShapeDtypeStruct((rows, LANE), R_DTYPE))
        out_specs.append(blk)
    out_shape.append(jax.ShapeDtypeStruct((8 * grid, LANE), jnp.float32))
    out_specs.append(mx_spec)

    kernel = functools.partial(_quantize_kernel, block_rows=block_rows,
                               n_valid=n_valid, need_mask=need_mask,
                               emit_r=emit_r)
    return pl.pallas_call(
        kernel,
        out_shape=tuple(out_shape),
        grid_spec=pltpu.PrefetchScalarGridSpec(
            num_scalar_prefetch=0,
            grid=(grid,),
            in_specs=[blk, smem],
            out_specs=tuple(out_specs)),
        compiler_params=pltpu.CompilerParams(
            dimension_semantics=("parallel",),
            vmem_limit_bytes=VMEM_LIMIT),
    )(t2d, scale11)


# ======================================================================
# Kernel 3: dequantize(x) + dequantize(y) fused with per-block max|d|
#           (packed int8 inputs, bf16 output)
# ======================================================================
def _dequant_add_kernel(q1sx_ref, q2sx_ref, q1sy_ref, q2sy_ref,
                        ax_ref, ay_ref, d_ref, mx_ref, *,
                        block_rows, n_valid, need_mask):
    def deq(q1s_ref, q2s_ref, a):
        p1 = q1s_ref[...].astype(jnp.int32)        # sign-extended packed byte
        p2 = q2s_ref[...].astype(jnp.int32)
        s1 = jnp.where(p1 < 0, -1.0, 1.0)          # bit7 set <=> negative
        s2 = jnp.where(p2 < 0, -1.0, 1.0)
        v1 = jnp.maximum(_exp2_neg(p1 & 0x7F), EPS)
        v2 = jnp.maximum(_exp2_neg(p2 & 0x7F), EPS)
        return a * (s1 * v1 + s2 * v2)

    d = (deq(q1sx_ref, q2sx_ref, ax_ref[0, 0])
         + deq(q1sy_ref, q2sy_ref, ay_ref[0, 0]))
    d_ref[...] = d.astype(d_ref.dtype)

    a = jnp.abs(d)
    if need_mask:
        a = jnp.where(_tail_mask(a.shape, block_rows, n_valid), a, 0.0)
    _store_partial_max(mx_ref, a)


def _dequant_add_call(q1sx, q2sx, q1sy, q2sy, ax11, ay11, n_valid, block_rows):
    rows, _ = q1sx.shape
    grid = _cdiv(rows, block_rows)
    need_mask = (rows % block_rows != 0) or (n_valid != rows * LANE)
    blk = pl.BlockSpec((block_rows, LANE), lambda i: (i, 0))
    mx_spec = pl.BlockSpec((8, LANE), lambda i: (i, 0))
    smem = pl.BlockSpec(memory_space=pltpu.MemorySpace.SMEM)
    kernel = functools.partial(_dequant_add_kernel, block_rows=block_rows,
                               n_valid=n_valid, need_mask=need_mask)
    d2d, mx = pl.pallas_call(
        kernel,
        out_shape=(jax.ShapeDtypeStruct((rows, LANE), D_DTYPE),
                   jax.ShapeDtypeStruct((8 * grid, LANE), jnp.float32)),
        grid_spec=pltpu.PrefetchScalarGridSpec(
            num_scalar_prefetch=0,
            grid=(grid,),
            in_specs=[blk] * 4 + [smem, smem],
            out_specs=(blk, mx_spec)),
        compiler_params=pltpu.CompilerParams(
            dimension_semantics=("parallel",),
            vmem_limit_bytes=VMEM_LIMIT),
    )(q1sx, q2sx, q1sy, q2sy, ax11, ay11)
    return d2d, jnp.max(mx)


# ======================================================================
# Packed-format helpers (pure JAX, outside the hot path)
# ======================================================================
def unpack_plane(packed):
    """Packed int8 (bit7 = sign, bits0..6 = q) -> (q int8, s int8 in {-1,+1})."""
    p = packed.astype(jnp.int32)
    q = (p & 0x7F).astype(jnp.int8)
    s = jnp.where(p < 0, -1, 1).astype(jnp.int8)
    return q, s


def dequantize_packed(qdict):
    """Pure-JAX LogQuantizedTensor.dequantize() for the packed dict format."""
    if qdict.get("r") is not None:
        return qdict["r"]
    a = qdict["a"].reshape((1,) * qdict["q1s"].ndim)
    q1, s1 = unpack_plane(qdict["q1s"])
    out = s1.astype(jnp.float32) * a * jnp.maximum(
        jnp.exp2(-q1.astype(jnp.float32)), EPS)
    if qdict.get("q2s") is not None:
        q2, s2 = unpack_plane(qdict["q2s"])
        out = out + s2.astype(jnp.float32) * a * jnp.maximum(
            jnp.exp2(-q2.astype(jnp.float32)), EPS)
    return out


# ======================================================================
# Module-level wrappers (functional state: running_max_abs, num_batches_tracked)
# ======================================================================
def _update_stats(max_abs, running_max_abs, num_batches_tracked, training):
    if not training:
        return running_max_abs, num_batches_tracked
    max_abs = jnp.maximum(max_abs, EPS)
    new_running = jnp.where(
        num_batches_tracked == 0,
        max_abs,
        max_abs * MOMENTUM + running_max_abs[0] * (1.0 - MOMENTUM))
    return jnp.reshape(new_running, (1,)), num_batches_tracked + 1


def logquant_add_forward(x, y, running_max_abs, num_batches_tracked, *,
                         training=True, block_rows=None):
    """activation_quantization == False path of LogQuantizedAdd.forward."""
    # TODO(synk): torch broadcasting of x + y not supported; shapes must match.
    assert x.shape == y.shape
    out_dtype = jnp.promote_types(x.dtype, y.dtype)
    x2d, n = _to_2d(x)
    y2d, _ = _to_2d(y)
    br = _pick_block_rows(x2d.shape[0], block_rows)
    out2d, max_abs = _add_with_absmax(x2d, y2d, n, br, out_dtype)
    output = _from_2d(out2d, n, x.shape)
    new_running, new_tracked = _update_stats(
        max_abs, running_max_abs, num_batches_tracked, training)
    return output, new_running, new_tracked


def quantize_tensor(t, scale, *, block_rows=None):
    """LogQuantUtils.quantize_tensor (per-tensor scale of shape (1,)).
    Sign bits live in bit 7 of the packed int8 planes; use unpack_plane() /
    dequantize_packed() to recover the torch-style q1/s/q2/s_err fields."""
    t2d, n = _to_2d(t)
    br = _pick_block_rows(t2d.shape[0], block_rows)
    scale11 = jnp.reshape(scale, (1, 1)).astype(jnp.float32)
    q1s2d, q2s2d, em = _quantize_call(t2d, scale11, n, br, emit_r=False)
    shape = t.shape
    return {
        "q1s": _from_2d(q1s2d, n, shape),       # packed q1 | sign
        "q2s": _from_2d(q2s2d, n, shape),       # packed q2 | sign(err)
        "a": jnp.reshape(scale, (1,)).astype(jnp.float32),
        "r": None,
        "err_max": jnp.max(em),
    }


def logquant_add_forward_quantized(xq, yq, running_max_abs, num_batches_tracked,
                                   *, training=True, block_rows=None):
    """activation_quantization == True path of LogQuantizedAdd.forward."""
    shape = xq["q1s"].shape
    assert yq["q1s"].shape == shape

    def prep(q):
        q1s2d, n = _to_2d(q["q1s"])
        if q.get("q2s") is not None:
            q2s2d, _ = _to_2d(q["q2s"])
        else:
            # TODO(synk): packed format cannot encode an exactly-zero second
            # term; q=127 dequantizes to +EPS*a per element (negligible).
            q2s2d = jnp.full_like(q1s2d, 127)
        a11 = jnp.reshape(q["a"], (1, 1)).astype(jnp.float32)
        return q1s2d, q2s2d, a11, n

    q1sx, q2sx, ax, n = prep(xq)
    q1sy, q2sy, ay, _ = prep(yq)
    br = _pick_block_rows(q1sx.shape[0], block_rows)

    # simulated_output = x.dequantize() + y.dequantize(), fused with max|d|
    d2d, max_abs = _dequant_add_call(q1sx, q2sx, q1sy, q2sy, ax, ay, n, br)
    new_running, new_tracked = _update_stats(
        max_abs, running_max_abs, num_batches_tracked, training)

    # quantize_log_output(simulated_output) with the *updated* running_max_abs;
    # the straight-through forward value r is fused into the quantize kernel.
    scale11 = jnp.reshape(new_running, (1, 1))
    q1s2d, q2s2d, r2d, em = _quantize_call(d2d, scale11, n, br, emit_r=True)

    out = {
        "q1s": _from_2d(q1s2d, n, shape),
        "q2s": _from_2d(q2s2d, n, shape),
        "a": new_running,
        "r": _from_2d(r2d, n, shape),           # bf16 straight-through value
        "err_max": jnp.max(em),
    }
    return out, new_running, new_tracked


# ======================================================================
# Demo / checks
# ======================================================================
if __name__ == "__main__":
    key = jax.random.PRNGKey(0)
    k1, k2 = jax.random.split(key)
    shape = (2, 4, 16, 16)  # NCHW
    x = jax.random.normal(k1, shape, dtype=jnp.float32)
    y = jax.random.normal(k2, shape, dtype=jnp.float32)

    running_max_abs = jnp.full((1,), EPS, dtype=jnp.float32)
    num_batches_tracked = jnp.array(0, dtype=jnp.int32)

    # ---- path 1: default (activation_quantization == False), training ----
    out, running_max_abs, num_batches_tracked = logquant_add_forward(
        x, y, running_max_abs, num_batches_tracked, training=True)
    out = jax.block_until_ready(out)
    ref = x + y
    assert out.shape == shape and out.dtype == jnp.float32
    assert bool(jnp.allclose(out, ref, atol=1e-6)), "add mismatch"
    ref_max = jnp.maximum(jnp.max(jnp.abs(ref)), EPS)
    assert bool(jnp.allclose(running_max_abs[0], ref_max, rtol=1e-5)), "stat mismatch"
    assert int(num_batches_tracked) == 1

    # bf16 inputs: cast happens in-kernel, no wrapper upcast copy
    out_bf, _, _ = logquant_add_forward(
        x.astype(jnp.bfloat16), y.astype(jnp.bfloat16),
        jnp.full((1,), EPS, jnp.float32), jnp.array(0, jnp.int32))
    out_bf = jax.block_until_ready(out_bf)
    assert out_bf.dtype == jnp.bfloat16
    assert bool(jnp.allclose(out_bf.astype(jnp.float32), ref, atol=0.1, rtol=0.05))

    # odd (non-128-divisible) size: exercises pad + in-kernel tail masking
    shape_odd = (2, 3, 5, 7)
    xo = jax.random.normal(k1, shape_odd, dtype=jnp.float32)
    yo = jax.random.normal(k2, shape_odd, dtype=jnp.float32)
    out_o, rma_o, _ = logquant_add_forward(
        xo, yo, jnp.full((1,), EPS, jnp.float32), jnp.array(0, jnp.int32))
    out_o = jax.block_until_ready(out_o)
    ref_o = xo + yo
    assert bool(jnp.allclose(out_o, ref_o, atol=1e-6)), "odd add mismatch"
    assert bool(jnp.allclose(rma_o[0], jnp.maximum(jnp.max(jnp.abs(ref_o)), EPS),
                             rtol=1e-5)), "odd stat mismatch"

    # ---- path 2: activation_quantization == True ----
    scale_x = jnp.maximum(jnp.max(jnp.abs(x)), EPS).reshape(1)
    scale_y = jnp.maximum(jnp.max(jnp.abs(y)), EPS).reshape(1)
    xq = quantize_tensor(x, scale_x)
    yq = quantize_tensor(y, scale_y)

    q1_x, s_x = unpack_plane(xq["q1s"])
    q1_ref = jnp.clip(jnp.round(-jnp.log2(jnp.abs(x) / scale_x[0] + EPS)), 0, QMAX)
    assert float(jnp.mean((q1_x == q1_ref.astype(jnp.int8)).astype(jnp.float32))) > 0.99
    s_ref = jnp.where(x < 0, -1, 1).astype(jnp.int8)
    assert float(jnp.mean((s_x == s_ref).astype(jnp.float32))) > 0.999

    rma_q = jnp.full((1,), EPS, dtype=jnp.float32)
    nbt_q = jnp.array(0, dtype=jnp.int32)
    out_q, rma_q, nbt_q = logquant_add_forward_quantized(
        xq, yq, rma_q, nbt_q, training=True)
    jax.block_until_ready(out_q["r"])

    assert out_q["q1s"].shape == shape and out_q["q1s"].dtype == jnp.int8
    assert bool(jnp.all(jnp.isfinite(out_q["r"].astype(jnp.float32))))

    # pure-JAX reference (starting from the bf16-stored simulated output)
    d_ref = dequantize_packed(xq) + dequantize_packed(yq)
    sc = jnp.maximum(jnp.max(jnp.abs(d_ref)), EPS)
    assert bool(jnp.allclose(rma_q[0], sc, rtol=1e-4)), "quantized stat mismatch"
    d_b = d_ref.astype(D_DTYPE).astype(jnp.float32)
    s_r = jnp.where(d_b >= 0, 1.0, -1.0)
    q1_r = jnp.clip(jnp.round(-jnp.log2(jnp.abs(d_b) / sc + EPS)), 0, QMAX)
    err_r = d_b / sc + EPS - jnp.exp2(-q1_r)
    serr_r = jnp.where(err_r >= 0, 1.0, -1.0)
    q2_r = jnp.clip(jnp.round(-jnp.log2(jnp.abs(err_r) / sc + EPS)), 0, QMAX)
    r_ref = (s_r * sc * jnp.maximum(jnp.exp2(-q1_r), EPS)
             + serr_r * sc * jnp.maximum(jnp.exp2(-q2_r), EPS))
    r_out = out_q["r"].astype(jnp.float32)
    frac_close = jnp.mean(
        (jnp.abs(r_out - r_ref) <= (1e-5 + 2e-2 * jnp.abs(r_ref))).astype(jnp.float32))
    assert float(frac_close) > 0.98, f"quantized path mismatch: {float(frac_close)}"

    # ---- multi-block / ragged-grid smoke test (grid > 1, "parallel" axis) ----
    shape_mb = (4, 8, 32, 32)  # 32768 elems -> 256 rows; block_rows=96 -> grid 3
    xm = jax.random.normal(k1, shape_mb, dtype=jnp.float32)
    ym = jax.random.normal(k2, shape_mb, dtype=jnp.float32)
    out_m, rma_m, _ = logquant_add_forward(
        xm, ym, jnp.full((1,), EPS, jnp.float32), jnp.array(0, jnp.int32),
        block_rows=96)
    out_m = jax.block_until_ready(out_m)
    ref_m = xm + ym
    assert bool(jnp.allclose(out_m, ref_m, atol=1e-6)), "mb add mismatch"
    assert bool(jnp.allclose(rma_m[0], jnp.maximum(jnp.max(jnp.abs(ref_m)), EPS),
                             rtol=1e-5)), "mb stat mismatch"

    scm = jnp.maximum(jnp.max(jnp.abs(xm)), EPS).reshape(1)
    xqm = quantize_tensor(xm, scm, block_rows=96)
    q1_m, _ = unpack_plane(xqm["q1s"])
    q1_m_ref = jnp.clip(jnp.round(-jnp.log2(jnp.abs(xm) / scm[0] + EPS)),
                        0, QMAX).astype(jnp.int8)
    assert float(jnp.mean((q1_m == q1_m_ref).astype(jnp.float32))) > 0.99

    yqm = quantize_tensor(ym, jnp.maximum(jnp.max(jnp.abs(ym)), EPS).reshape(1),
                          block_rows=96)
    out_qm, _, _ = logquant_add_forward_quantized(
        xqm, yqm, jnp.full((1,), EPS, jnp.float32), jnp.array(0, jnp.int32),
        training=True, block_rows=96)
    jax.block_until_ready(out_qm["r"])
    assert bool(jnp.all(jnp.isfinite(out_qm["r"].astype(jnp.float32))))

    print("KERNEL_OK")
</pallas_src>

<mosaic_0001>
module attributes {stable_mosaic.version = 11 : i64} {
  func.func @_add_absmax_kernel(%arg0: i32, %arg1: memref<32x128xf32, #tpu.memory_space<vmem>>, %arg2: memref<32x128xf32, #tpu.memory_space<vmem>>, %arg3: memref<32x128xf32, #tpu.memory_space<vmem>>, %arg4: memref<8x128xf32, #tpu.memory_space<vmem>>) attributes {dimension_semantics = [#tpu.dimension_semantics<parallel>], iteration_bounds = array<i64: 1>, scalar_prefetch = 0 : i64, scratch_operands = 0 : i64, tpu.core_type = #tpu.core_type<tc>, window_params = [{transform_indices = @transform_0, window_bounds = array<i64: 32, 128>}, {transform_indices = @transform_1, window_bounds = array<i64: 32, 128>}, {transform_indices = @transform_2, window_bounds = array<i64: 32, 128>}, {transform_indices = @transform_3, window_bounds = array<i64: 8, 128>}]} {
    %c0 = arith.constant 0 : index
    %c0_0 = arith.constant 0 : index
    %0 = vector.load %arg1[%c0, %c0_0] : memref<32x128xf32, #tpu.memory_space<vmem>>, vector<32x128xf32>
    %c0_1 = arith.constant 0 : index
    %c0_2 = arith.constant 0 : index
    %1 = vector.load %arg2[%c0_1, %c0_2] : memref<32x128xf32, #tpu.memory_space<vmem>>, vector<32x128xf32>
    %2 = arith.addf %0, %1 : vector<32x128xf32>
    %c0_3 = arith.constant 0 : index
    %c0_4 = arith.constant 0 : index
    %3 = vector.load %arg3[%c0_3, %c0_4] : memref<32x128xf32, #tpu.memory_space<vmem>>, vector<32x128xf32>
    tpu.vector_store %arg3[%c0_3, %c0_4], %2 {strides = array<i32>} : memref<32x128xf32, #tpu.memory_space<vmem>>, vector<32x128xf32>,
    %4 = math.absf %2 : vector<32x128xf32>
    %c32_i32 = arith.constant 32 : i32
    %5 = arith.muli %arg0, %c32_i32 : i32
    %6 = tpu.iota {dimensions = array<i32: 0>} : vector<32x128xi32>
    %7 = vector.broadcast %5 : i32 to vector<32x128xi32>
    %8 = arith.addi %6, %7 : vector<32x128xi32>
    %9 = tpu.iota {dimensions = array<i32: 1>} : vector<32x128xi32>
    %c128_i32 = arith.constant 128 : i32
    %10 = vector.broadcast %c128_i32 : i32 to vector<32x128xi32>
    %11 = arith.muli %8, %10 : vector<32x128xi32>
    %12 = arith.addi %11, %9 : vector<32x128xi32>
    %c2048_i32 = arith.constant 2048 : i32
    %13 = vector.broadcast %c2048_i32 : i32 to vector<32x128xi32>
    %14 = arith.cmpi slt, %12, %13 : vector<32x128xi32>
    %cst = arith.constant 0.000000e+00 : f32
    %15 = vector.broadcast %cst : f32 to vector<32x128xf32>
    %16 = arith.select %14, %4, %15 : vector<32x128xi1>, vector<32x128xf32>
    %cst_5 = arith.constant dense<0xFF800000> : vector<128xf32>
    %17 = vector.multi_reduction <maximumf>, %16, %cst_5 [0] : vector<32x128xf32> to vector<128xf32>
    %18 = vector.shape_cast %17 : vector<128xf32> to vector<1x128xf32>
    %19 = vector.shape_cast %18 : vector<1x128xf32> to vector<1x128xf32>
    %20 = vector.broadcast %19 : vector<1x128xf32> to vector<8x128xf32>
    %c0_6 = arith.constant 0 : index
    %c0_7 = arith.constant 0 : index
    %21 = vector.load %arg4[%c0_6, %c0_7] : memref<8x128xf32, #tpu.memory_space<vmem>>, vector<8x128xf32>
    tpu.vector_store %arg4[%c0_6, %c0_7], %20 {strides = array<i32>} : memref<8x128xf32, #tpu.memory_space<vmem>>, vector<8x128xf32>,
    return
  }
  func.func @transform_0(%arg0: i32) -> (i32, i32) {
    %c0_i32 = arith.constant 0 : i32
    %c0_i32_0 = arith.constant 0 : i32
    return %arg0, %c0_i32 : i32, i32
  }
  func.func @transform_1(%arg0: i32) -> (i32, i32) {
    %c0_i32 = arith.constant 0 : i32
    %c0_i32_0 = arith.constant 0 : i32
    return %arg0, %c0_i32 : i32, i32
  }
  func.func @transform_2(%arg0: i32) -> (i32, i32) {
    %c0_i32 = arith.constant 0 : i32
    %c0_i32_0 = arith.constant 0 : i32
    return %arg0, %c0_i32 : i32, i32
  }
  func.func @transform_3(%arg0: i32) -> (i32, i32) {
    %c0_i32 = arith.constant 0 : i32
    %c0_i32_0 = arith.constant 0 : i32
    return %arg0, %c0_i32 : i32, i32
  }
}

</mosaic_0001>

<llo_original>
// kernel: tpu_custom_call.1
$region0: #{tpu_custom_call.1}
  #allocation0 [shape = 'u32[]', space=smem, size = 0x4, offset = 0x4, fixed_abs, tag = 'smem constant byte address 0x4 - core index']
  #allocation1 [shape = 'u32[72,128]{1,0:T(1,128)}', space=vmem, size = 0x9000, scoped, tag = 'internal scratch']
  %s0 = inlined_call_operand.hbm [shape: f32[32,128], index: 0, kind: input, shape index: {}]
  %s1 = inlined_call_operand.hbm [shape: f32[32,128], index: 1, kind: input, shape index: {}]
  %s2 = inlined_call_operand.hbm [shape: f32[32,128], index: 2, kind: output, shape index: {0}]
  %s3 = inlined_call_operand.hbm [shape: f32[8,128], index: 3, kind: output, shape index: {1}]
  %4 = xla_tuple %s2, %s3
  %s5 = sld [smem:[#allocation0]]
  $region34: #{tpu_custom_call.1} parent=0
    _
  %s7 = ssub.s32 1, %s5
  %s8 = scalar_select 0, %s7, %s5
  $region1: #{tpu_custom_call.1} parent=0
    #allocation2 [shape = 'u8[16384]{0}', space=vmem, size = 0x4000, scoped, tag = 'input window, operand 0, single buffered']
    #allocation3 [shape = 's32[1]{0}', space=sflag, size = 0x4, scoped, tag = 'scoped memory for tpu_custom_call.1']
    #allocation4 [shape = 's32[1]{0}', space=sflag, size = 0x4, scoped, tag = 'scoped memory for tpu_custom_call.1']
    #allocation5 [shape = 'u8[16384]{0}', space=vmem, size = 0x4000, scoped, tag = 'input window, operand 1, single buffered']
    #allocation6 [shape = 's32[1]{0}', space=sflag, size = 0x4, scoped, tag = 'scoped memory for tpu_custom_call.1']
    #allocation7 [shape = 'u8[16384]{0}', space=vmem, size = 0x4000, scoped, tag = 'output window, operand 0, single buffered']
    #allocation8 [shape = 'u8[4096]{0}', space=vmem, size = 0x1000, scoped, tag = 'output window, operand 1, single buffered']
    #allocation9 [shape = 's32[1]{0}', space=sflag, size = 0x4, scoped, tag = 'scoped memory for tpu_custom_call.1']
    %9 = vsyncpa [#allocation3], 0
    %10 = vsyncpa [#allocation6], 0
    %11 = vsyncpa [#allocation4], 0
    %12 = vsyncpa [#allocation9], 0
    // Predicated region
    $region2: #{tpu_custom_call.1} parent=1 // pred_check
      _
    $region3: #{tpu_custom_call.1} parent=1 // pred_check_branch
      %14 = sbr.rel (0) target = $region5
    $region4: #{tpu_custom_call.1} parent=1 // pred_region
      %16 = vsyncadd [#allocation3], 0
      %s17 = sshll.u32 %s0, 4
      %s18 = int_to_ptr.hbm [resolvable:$true] %s17
      %s19 = sshll.u32 [#allocation2], 4
      %s20 = int_to_ptr.vmem [resolvable:$true] %s19
      %25 = dma.hbm_to_vmem [thread:$0]  %s18, 512, %s20, [#allocation3], 128, 128, 8
    $region5: #{tpu_custom_call.1} parent=1 // pred_fallthru
      _
    // Predicated region
    $region6: #{tpu_custom_call.1} parent=1 // pred_check
      _
    $region7: #{tpu_custom_call.1} parent=1 // pred_check_branch
      %27 = sbr.rel (0) target = $region9
    $region8: #{tpu_custom_call.1} parent=1 // pred_region
      %29 = vsyncadd [#allocation6], 0
      %s30 = sshll.u32 %s1, 4
      %s31 = int_to_ptr.hbm [resolvable:$true] %s30
      %s32 = sshll.u32 [#allocation5], 4
      %s33 = int_to_ptr.vmem [resolvable:$true] %s32
      %38 = dma.hbm_to_vmem [thread:$0]  %s31, 512, %s33, [#allocation6], 128, 128, 8
    $region9: #{tpu_custom_call.1} parent=1 // pred_fallthru
      _
    // Predicated region
    $region10: #{tpu_custom_call.1} parent=1 // pred_check
      _
    $region11: #{tpu_custom_call.1} parent=1 // pred_check_branch
      %40 = sbr.rel (0) target = $region13
    $region12: #{tpu_custom_call.1} parent=1 // pred_region
      %42 = dma.done [#allocation3], 512
    $region13: #{tpu_custom_call.1} parent=1 // pred_fallthru
      _
    // Predicated region
    $region14: #{tpu_custom_call.1} parent=1 // pred_check
      _
    $region15: #{tpu_custom_call.1} parent=1 // pred_check_branch
      %44 = sbr.rel (0) target = $region17
    $region16: #{tpu_custom_call.1} parent=1 // pred_region
      %46 = dma.done [#allocation6], 512
    $region17: #{tpu_custom_call.1} parent=1 // pred_fallthru
      _
    %v47 = vld [vmem:[#allocation2] sm:$0xff]
    %v48 = vld [vmem:[#allocation2 + $0x8] sm:$0xff]
    %v49 = vld [vmem:[#allocation2 + $0x10] sm:$0xff]
    %v50 = vld [vmem:[#allocation2 + $0x18] sm:$0xff]
    %v51 = vld [vmem:[#allocation5] sm:$0xff]
    %v52 = vld [vmem:[#allocation5 + $0x8] sm:$0xff]
    %v53 = vld [vmem:[#allocation5 + $0x10] sm:$0xff]
    %v54 = vld [vmem:[#allocation5 + $0x18] sm:$0xff]
    %v55 = vadd.f32 %v47, %v51
    %v56 = vadd.f32 %v48, %v52
    %v57 = vadd.f32 %v49, %v53
    %v58 = vadd.f32 %v50, %v54
    %59 = vst [vmem:[#allocation7] sm:$0xff] %v55
    %60 = vst [vmem:[#allocation7 + $0x8] sm:$0xff] %v56
    %61 = vst [vmem:[#allocation7 + $0x10] sm:$0xff] %v57
    %62 = vst [vmem:[#allocation7 + $0x18] sm:$0xff] %v58
    %v63 = vand.u32 2147483647, %v55
    %v64 = vand.u32 2147483647, %v56
    %v65 = vand.u32 2147483647, %v57
    %v66 = vand.u32 2147483647, %v58
    %s67 = smul.u32 0, 32
    %v68 = vlaneseq
    %v69 = vshrl.u32 %v68, 7
    %v70 = vadd.s32 %v69, 8
    %v71 = vadd.s32 %v69, 16
    %v72 = vadd.s32 %v69, 24
    %v73 = vstv %s67
    %v74 = vadd.s32 %v69, %v73
    %v75 = vadd.s32 %v70, %v73
    %v76 = vadd.s32 %v71, %v73
    %v77 = vadd.s32 %v72, %v73
    %v78 = vlaneseq
    %v79 = vand.u32 %v78, 127
    %v80 = vmul.u32 %v74, 128
    %v81 = vmul.u32 %v75, 128
    %v82 = vmul.u32 %v76, 128
    %v83 = vmul.u32 %v77, 128
    %v84 = vadd.s32 %v80, %v79
    %v85 = vadd.s32 %v81, %v79
    %v86 = vadd.s32 %v82, %v79
    %v87 = vadd.s32 %v83, %v79
    %vm88 = vcmp.lt.s32.totalorder %v84, 2048
    %vm89 = vcmp.lt.s32.totalorder %v85, 2048
    %vm90 = vcmp.lt.s32.totalorder %v86, 2048
    %vm91 = vcmp.lt.s32.totalorder %v87, 2048
    %v92 = vsel %vm88, %v63, 0.0
    %v93 = vsel %vm89, %v64, 0.0
    %v94 = vsel %vm90, %v65, 0.0
    %v95 = vsel %vm91, %v66, 0.0
    %v96 = vmax.f32 %v92, %v93
    %v97 = vmax.f32 %v94, %v95
    %v98 = vmax.f32 %v96, %v97
    %v99 = vrot.slane %v98, 4
    %v100 = vmax.f32 %v98, %v99
    %v101 = vrot.slane %v100, 2
    %v102 = vmax.f32 %v100, %v101
    %v103 = vrot.slane %v102, 1
    %v104 = vmax.f32 %v102, %v103
    %105 = vst [vmem:[#allocation8] sm:$0xff] %v104
    // Predicated region
    $region18: #{tpu_custom_call.1} parent=1 // pred_check
      _
    $region19: #{tpu_custom_call.1} parent=1 // pred_check_branch
      %107 = sbr.rel (0) target = $region21
    $region20: #{tpu_custom_call.1} parent=1 // pred_region
      %109 = vsyncadd [#allocation4], 0
      %s110 = sshll.u32 [#allocation7], 4
      %s111 = int_to_ptr.vmem [resolvable:$true] %s110
      %s112 = sshll.u32 %s2, 4
      %s113 = int_to_ptr.hbm [resolvable:$true] %s112
      %118 = dma.vmem_to_hbm [thread:$0]  %s111, 512, %s113, [#allocation4], 128, 128, 8
    $region21: #{tpu_custom_call.1} parent=1 // pred_fallthru
      _
    // Predicated region
    $region22: #{tpu_custom_call.1} parent=1 // pred_check
      _
    $region23: #{tpu_custom_call.1} parent=1 // pred_check_branch
      %120 = sbr.rel (0) target = $region25
    $region24: #{tpu_custom_call.1} parent=1 // pred_region
      %122 = vsyncadd [#allocation9], 0
      %s124 = sshll.u32 [#allocation8], 4
      %s125 = int_to_ptr.vmem [resolvable:$true] %s124
      %s126 = sshll.u32 %s3, 4
      %s127 = int_to_ptr.hbm [resolvable:$true] %s126
      %129 = dma.vmem_to_hbm [thread:$0]  %s125, 128, %s127, [#allocation9]
    $region25: #{tpu_custom_call.1} parent=1 // pred_fallthru
      _
    // Predicated region
    $region26: #{tpu_custom_call.1} parent=1 // pred_check
      _
    $region27: #{tpu_custom_call.1} parent=1 // pred_check_branch
      %131 = sbr.rel (0) target = $region29
    $region28: #{tpu_custom_call.1} parent=1 // pred_region
      %133 = dma.done [#allocation4], 512
    $region29: #{tpu_custom_call.1} parent=1 // pred_fallthru
      _
    // Predicated region
    $region30: #{tpu_custom_call.1} parent=1 // pred_check
      _
    $region31: #{tpu_custom_call.1} parent=1 // pred_check_branch
      %135 = sbr.rel (0) target = $region33
    $region32: #{tpu_custom_call.1} parent=1 // pred_region
      %137 = dma.done [#allocation9], 128
    $region33: #{tpu_custom_call.1} parent=1 // pred_fallthru
      _
    %138 = vsyncpa [#allocation3], 1
    %139 = vsyncpa [#allocation6], 1
    %140 = vsyncpa [#allocation4], 1
    %141 = vsyncpa [#allocation9], 1

</llo_original>
